<compile_context>
chip_gen: v5e
topology: v5e:2x2
jax: 0.10.0
libtpu: 0.0.40
codegen_flags: <defaults>
</compile_context>

<pallas_src>
import functools

import numpy as np
import jax
import jax.numpy as jnp
from jax.experimental import pallas as pl
from jax.experimental.pallas import tpu as pltpu

NEG_SLOPE = 0.01   # PyTorch F.leaky_relu default
C_PAD = 8          # pad input channels to one full sublane tile


def _leaky_relu(x):
    return jnp.where(x > 0, x, NEG_SLOPE * x)


def _twolayer_kernel(x_ref, w1_ref, b1_ref, w2_ref, b2_ref, mask_ref, o_ref, *, W):
    # x_ref:    (1, 8, S)   one image, channels zero-padded 2->8, spatial flattened
    # w1_ref:   (8, 72)     conv1 weights, K ordered (kh, kw, ci_pad8)
    # b1_ref:   (8, 1)
    # w2_ref:   (28, 72)    conv2 weights, K ordered (kh, kw, ci)
    # b2_ref:   (28, 1)
    # mask_ref: (9, S)      per-tap validity masks (implements the zero padding)
    # o_ref:    (1, 28, S)  output, NCHW-flat, lane dense
    masks = mask_ref[...]

    def conv3x3(a, w_mat, b):
        # a: (C, S) with channels on sublanes, flat spatial on lanes.
        # Tap (dh, dw) at output p = h*W + w reads a[:, p + dh*W + dw]; the flat
        # shift is exact inside the image and the mask zeroes all out-of-range taps.
        taps = []
        t = 0
        for dh in (-1, 0, 1):
            for dw in (-1, 0, 1):
                off = dh * W + dw
                # jnp.roll (static shift) -> lane slice+concat; pltpu.roll would also work.
                shifted = a if off == 0 else jnp.roll(a, -off, axis=1)
                taps.append(shifted if (dh == 0 and dw == 0) else shifted * masks[t])
                t += 1
        p = jnp.concatenate(taps, axis=0)                       # (9*C, S), 8-aligned concat
        y = jnp.dot(w_mat, p, preferred_element_type=jnp.float32) + b
        return _leaky_relu(y)

    h = conv3x3(x_ref[0], w1_ref[...], b1_ref[...])             # (8, S)
    o_ref[0] = conv3x3(h, w2_ref[...], b2_ref[...])             # (28, S)


def twolayer_forward(x_nchw, w1, b1, w2, b2):
    """x_nchw: (N, 2, H, W) f32 ; w1: (8,2,3,3), b1: (8,), w2: (28,8,3,3), b2: (28,)
    Returns (N, 28, H, W) f32 — same semantics as the PyTorch module."""
    N, c_in, H, W = x_nchw.shape
    c_mid = w1.shape[0]
    c_out = w2.shape[0]
    S = H * W

    # ---- cheap layout-only host prep (no spatial pad, no NHWC transpose) ----
    x_flat = x_nchw.reshape(N, c_in, S).astype(jnp.float32)
    x_flat = jnp.pad(x_flat, ((0, 0), (0, C_PAD - c_in), (0, 0)))          # (N, 8, S)

    w1_k = jnp.transpose(w1.astype(jnp.float32), (0, 2, 3, 1))             # (8,3,3,2)
    w1_k = jnp.pad(w1_k, ((0, 0), (0, 0), (0, 0), (0, C_PAD - c_in)))      # (8,3,3,8)
    w1_mat = w1_k.reshape(c_mid, 9 * C_PAD)                                # (8,72)
    w2_mat = jnp.transpose(w2.astype(jnp.float32), (0, 2, 3, 1)).reshape(c_out, 9 * c_mid)  # (28,72)
    b1_col = b1.reshape(c_mid, 1).astype(jnp.float32)
    b2_col = b2.reshape(c_out, 1).astype(jnp.float32)

    # Static per-tap validity masks: mask[t, h*W+w] = 1 iff (h+dh, w+dw) is inside the image.
    hh, ww = np.meshgrid(np.arange(H), np.arange(W), indexing="ij")
    hh = hh.reshape(-1)
    ww = ww.reshape(-1)
    masks_np = np.zeros((9, S), np.float32)
    t = 0
    for dh in (-1, 0, 1):
        for dw in (-1, 0, 1):
            valid = (hh + dh >= 0) & (hh + dh < H) & (ww + dw >= 0) & (ww + dw < W)
            masks_np[t] = valid.astype(np.float32)
            t += 1
    masks = jnp.asarray(masks_np)

    kernel = functools.partial(_twolayer_kernel, W=W)

    out_flat = pl.pallas_call(
        kernel,
        out_shape=jax.ShapeDtypeStruct((N, c_out, S), jnp.float32),
        grid_spec=pltpu.PrefetchScalarGridSpec(
            num_scalar_prefetch=0,
            grid=(N,),
            in_specs=[
                pl.BlockSpec((1, C_PAD, S), lambda n: (n, 0, 0)),          # image n
                pl.BlockSpec((c_mid, 9 * C_PAD), lambda n: (0, 0)),        # w1 (resident)
                pl.BlockSpec((c_mid, 1), lambda n: (0, 0)),                # b1
                pl.BlockSpec((c_out, 9 * c_mid), lambda n: (0, 0)),        # w2
                pl.BlockSpec((c_out, 1), lambda n: (0, 0)),                # b2
                pl.BlockSpec((9, S), lambda n: (0, 0)),                    # masks
            ],
            out_specs=pl.BlockSpec((1, c_out, S), lambda n: (n, 0, 0)),
        ),
        compiler_params=pltpu.CompilerParams(
            dimension_semantics=("parallel",)),                            # 2-way across v7x TCs
    )(x_flat, w1_mat, b1_col, w2_mat, b2_col, masks)

    # Free contiguous reshape: output is already NCHW-flat.
    return out_flat.reshape(N, c_out, H, W)


def _reference(x_nchw, w1, b1, w2, b2):
    """Pure-JAX reference matching torch.nn.Conv2d semantics (NCHW, OIHW)."""
    def conv(x, w, b):
        y = jax.lax.conv_general_dilated(
            x, w, window_strides=(1, 1), padding=((1, 1), (1, 1)),
            dimension_numbers=("NCHW", "OIHW", "NCHW"))
        return y + b.reshape(1, -1, 1, 1)
    h = jax.nn.leaky_relu(conv(x_nchw, w1, b1), NEG_SLOPE)
    return jax.nn.leaky_relu(conv(h, w2, b2), NEG_SLOPE)


if __name__ == "__main__":
    key = jax.random.PRNGKey(0)
    kx, k1, k2, k3, k4 = jax.random.split(key, 5)

    N, C_IN, H, W = 2, 2, 16, 16
    C_MID, C_OUT = 8, 28

    x = jax.random.normal(kx, (N, C_IN, H, W), jnp.float32)
    # Deterministic synthetic parameters (shapes per nn.Conv2d: OIHW weights, (O,) bias).
    w1 = 0.1 * jax.random.normal(k1, (C_MID, C_IN, 3, 3), jnp.float32)
    b1 = 0.1 * jax.random.normal(k2, (C_MID,), jnp.float32)
    w2 = 0.1 * jax.random.normal(k3, (C_OUT, C_MID, 3, 3), jnp.float32)
    b2 = 0.1 * jax.random.normal(k4, (C_OUT,), jnp.float32)

    out = jax.block_until_ready(twolayer_forward(x, w1, b1, w2, b2))
    ref = jax.block_until_ready(_reference(x, w1, b1, w2, b2))

    assert out.shape == (N, C_OUT, H, W), out.shape
    assert jnp.allclose(out, ref, atol=1e-4, rtol=1e-4), float(jnp.max(jnp.abs(out - ref)))
    print("KERNEL_OK")
</pallas_src>

<mosaic_0001>
module attributes {stable_mosaic.version = 11 : i64} {
  func.func @_twolayer_kernel(%arg0: i32, %arg1: memref<1x8x256xf32, #tpu.memory_space<vmem>>, %arg2: memref<8x72xf32, #tpu.memory_space<vmem>>, %arg3: memref<8x1xf32, #tpu.memory_space<vmem>>, %arg4: memref<28x72xf32, #tpu.memory_space<vmem>>, %arg5: memref<28x1xf32, #tpu.memory_space<vmem>>, %arg6: memref<9x256xf32, #tpu.memory_space<vmem>>, %arg7: memref<1x28x256xf32, #tpu.memory_space<vmem>>) attributes {dimension_semantics = [#tpu.dimension_semantics<parallel>], iteration_bounds = array<i64: 2>, scalar_prefetch = 0 : i64, scratch_operands = 0 : i64, tpu.core_type = #tpu.core_type<tc>, window_params = [{transform_indices = @transform_0, window_bounds = array<i64: 1, 8, 256>}, {pipeline_mode = #tpu.pipeline_mode<synchronous>, transform_indices = @transform_1, window_bounds = array<i64: 8, 72>}, {pipeline_mode = #tpu.pipeline_mode<synchronous>, transform_indices = @transform_2, window_bounds = array<i64: 8, 1>}, {pipeline_mode = #tpu.pipeline_mode<synchronous>, transform_indices = @transform_3, window_bounds = array<i64: 28, 72>}, {pipeline_mode = #tpu.pipeline_mode<synchronous>, transform_indices = @transform_4, window_bounds = array<i64: 28, 1>}, {pipeline_mode = #tpu.pipeline_mode<synchronous>, transform_indices = @transform_5, window_bounds = array<i64: 9, 256>}, {transform_indices = @transform_6, window_bounds = array<i64: 1, 28, 256>}]} {
    %c0 = arith.constant 0 : index
    %c0_0 = arith.constant 0 : index
    %0 = vector.load %arg6[%c0, %c0_0] : memref<9x256xf32, #tpu.memory_space<vmem>>, vector<9x256xf32>
    %c0_1 = arith.constant 0 : index
    %c0_2 = arith.constant 0 : index
    %c0_3 = arith.constant 0 : index
    %1 = vector.load %arg1[%c0_1, %c0_2, %c0_3] : memref<1x8x256xf32, #tpu.memory_space<vmem>>, vector<1x8x256xf32>
    %2 = vector.shape_cast %1 : vector<1x8x256xf32> to vector<8x256xf32>
    %c0_4 = arith.constant 0 : index
    %c0_5 = arith.constant 0 : index
    %3 = vector.load %arg2[%c0_4, %c0_5] : memref<8x72xf32, #tpu.memory_space<vmem>>, vector<8x72xf32>
    %c0_6 = arith.constant 0 : index
    %c0_7 = arith.constant 0 : index
    %4 = vector.load %arg3[%c0_6, %c0_7] : memref<8x1xf32, #tpu.memory_space<vmem>>, vector<8x1xf32>
    %5 = vector.extract_strided_slice %2 {offsets = [0, 239], sizes = [8, 17], strides = [1, 1]} : vector<8x256xf32> to vector<8x17xf32>
    %6 = vector.extract_strided_slice %2 {offsets = [0, 0], sizes = [8, 239], strides = [1, 1]} : vector<8x256xf32> to vector<8x239xf32>
    %7 = tpu.concatenate %5, %6 in 1 : vector<8x17xf32>, vector<8x239xf32> -> vector<8x256xf32>
    %8 = vector.extract_strided_slice %0 {offsets = [0, 0], sizes = [1, 256], strides = [1, 1]} : vector<9x256xf32> to vector<1x256xf32>
    %9 = vector.shape_cast %8 : vector<1x256xf32> to vector<256xf32>
    %10 = vector.shape_cast %9 : vector<256xf32> to vector<1x256xf32>
    %11 = vector.broadcast %10 : vector<1x256xf32> to vector<8x256xf32>
    %12 = arith.mulf %7, %11 : vector<8x256xf32>
    %13 = vector.extract_strided_slice %2 {offsets = [0, 240], sizes = [8, 16], strides = [1, 1]} : vector<8x256xf32> to vector<8x16xf32>
    %14 = vector.extract_strided_slice %2 {offsets = [0, 0], sizes = [8, 240], strides = [1, 1]} : vector<8x256xf32> to vector<8x240xf32>
    %15 = tpu.concatenate %13, %14 in 1 : vector<8x16xf32>, vector<8x240xf32> -> vector<8x256xf32>
    %16 = vector.extract_strided_slice %0 {offsets = [1, 0], sizes = [1, 256], strides = [1, 1]} : vector<9x256xf32> to vector<1x256xf32>
    %17 = vector.shape_cast %16 : vector<1x256xf32> to vector<256xf32>
    %18 = vector.shape_cast %17 : vector<256xf32> to vector<1x256xf32>
    %19 = vector.broadcast %18 : vector<1x256xf32> to vector<8x256xf32>
    %20 = arith.mulf %15, %19 : vector<8x256xf32>
    %21 = vector.extract_strided_slice %2 {offsets = [0, 241], sizes = [8, 15], strides = [1, 1]} : vector<8x256xf32> to vector<8x15xf32>
    %22 = vector.extract_strided_slice %2 {offsets = [0, 0], sizes = [8, 241], strides = [1, 1]} : vector<8x256xf32> to vector<8x241xf32>
    %23 = tpu.concatenate %21, %22 in 1 : vector<8x15xf32>, vector<8x241xf32> -> vector<8x256xf32>
    %24 = vector.extract_strided_slice %0 {offsets = [2, 0], sizes = [1, 256], strides = [1, 1]} : vector<9x256xf32> to vector<1x256xf32>
    %25 = vector.shape_cast %24 : vector<1x256xf32> to vector<256xf32>
    %26 = vector.shape_cast %25 : vector<256xf32> to vector<1x256xf32>
    %27 = vector.broadcast %26 : vector<1x256xf32> to vector<8x256xf32>
    %28 = arith.mulf %23, %27 : vector<8x256xf32>
    %29 = vector.extract_strided_slice %2 {offsets = [0, 255], sizes = [8, 1], strides = [1, 1]} : vector<8x256xf32> to vector<8x1xf32>
    %30 = vector.extract_strided_slice %2 {offsets = [0, 0], sizes = [8, 255], strides = [1, 1]} : vector<8x256xf32> to vector<8x255xf32>
    %31 = tpu.concatenate %29, %30 in 1 : vector<8x1xf32>, vector<8x255xf32> -> vector<8x256xf32>
    %32 = vector.extract_strided_slice %0 {offsets = [3, 0], sizes = [1, 256], strides = [1, 1]} : vector<9x256xf32> to vector<1x256xf32>
    %33 = vector.shape_cast %32 : vector<1x256xf32> to vector<256xf32>
    %34 = vector.shape_cast %33 : vector<256xf32> to vector<1x256xf32>
    %35 = vector.broadcast %34 : vector<1x256xf32> to vector<8x256xf32>
    %36 = arith.mulf %31, %35 : vector<8x256xf32>
    %37 = vector.extract_strided_slice %2 {offsets = [0, 1], sizes = [8, 255], strides = [1, 1]} : vector<8x256xf32> to vector<8x255xf32>
    %38 = vector.extract_strided_slice %2 {offsets = [0, 0], sizes = [8, 1], strides = [1, 1]} : vector<8x256xf32> to vector<8x1xf32>
    %39 = tpu.concatenate %37, %38 in 1 : vector<8x255xf32>, vector<8x1xf32> -> vector<8x256xf32>
    %40 = vector.extract_strided_slice %0 {offsets = [5, 0], sizes = [1, 256], strides = [1, 1]} : vector<9x256xf32> to vector<1x256xf32>
    %41 = vector.shape_cast %40 : vector<1x256xf32> to vector<256xf32>
    %42 = vector.shape_cast %41 : vector<256xf32> to vector<1x256xf32>
    %43 = vector.broadcast %42 : vector<1x256xf32> to vector<8x256xf32>
    %44 = arith.mulf %39, %43 : vector<8x256xf32>
    %45 = vector.extract_strided_slice %2 {offsets = [0, 15], sizes = [8, 241], strides = [1, 1]} : vector<8x256xf32> to vector<8x241xf32>
    %46 = vector.extract_strided_slice %2 {offsets = [0, 0], sizes = [8, 15], strides = [1, 1]} : vector<8x256xf32> to vector<8x15xf32>
    %47 = tpu.concatenate %45, %46 in 1 : vector<8x241xf32>, vector<8x15xf32> -> vector<8x256xf32>
    %48 = vector.extract_strided_slice %0 {offsets = [6, 0], sizes = [1, 256], strides = [1, 1]} : vector<9x256xf32> to vector<1x256xf32>
    %49 = vector.shape_cast %48 : vector<1x256xf32> to vector<256xf32>
    %50 = vector.shape_cast %49 : vector<256xf32> to vector<1x256xf32>
    %51 = vector.broadcast %50 : vector<1x256xf32> to vector<8x256xf32>
    %52 = arith.mulf %47, %51 : vector<8x256xf32>
    %53 = vector.extract_strided_slice %2 {offsets = [0, 16], sizes = [8, 240], strides = [1, 1]} : vector<8x256xf32> to vector<8x240xf32>
    %54 = vector.extract_strided_slice %2 {offsets = [0, 0], sizes = [8, 16], strides = [1, 1]} : vector<8x256xf32> to vector<8x16xf32>
    %55 = tpu.concatenate %53, %54 in 1 : vector<8x240xf32>, vector<8x16xf32> -> vector<8x256xf32>
    %56 = vector.extract_strided_slice %0 {offsets = [7, 0], sizes = [1, 256], strides = [1, 1]} : vector<9x256xf32> to vector<1x256xf32>
    %57 = vector.shape_cast %56 : vector<1x256xf32> to vector<256xf32>
    %58 = vector.shape_cast %57 : vector<256xf32> to vector<1x256xf32>
    %59 = vector.broadcast %58 : vector<1x256xf32> to vector<8x256xf32>
    %60 = arith.mulf %55, %59 : vector<8x256xf32>
    %61 = vector.extract_strided_slice %2 {offsets = [0, 17], sizes = [8, 239], strides = [1, 1]} : vector<8x256xf32> to vector<8x239xf32>
    %62 = vector.extract_strided_slice %2 {offsets = [0, 0], sizes = [8, 17], strides = [1, 1]} : vector<8x256xf32> to vector<8x17xf32>
    %63 = tpu.concatenate %61, %62 in 1 : vector<8x239xf32>, vector<8x17xf32> -> vector<8x256xf32>
    %64 = vector.extract_strided_slice %0 {offsets = [8, 0], sizes = [1, 256], strides = [1, 1]} : vector<9x256xf32> to vector<1x256xf32>
    %65 = vector.shape_cast %64 : vector<1x256xf32> to vector<256xf32>
    %66 = vector.shape_cast %65 : vector<256xf32> to vector<1x256xf32>
    %67 = vector.broadcast %66 : vector<1x256xf32> to vector<8x256xf32>
    %68 = arith.mulf %63, %67 : vector<8x256xf32>
    %69 = tpu.concatenate %12, %20, %28, %36, %2, %44, %52, %60, %68 in 0 : vector<8x256xf32>, vector<8x256xf32>, vector<8x256xf32>, vector<8x256xf32>, vector<8x256xf32>, vector<8x256xf32>, vector<8x256xf32>, vector<8x256xf32>, vector<8x256xf32> -> vector<72x256xf32>
    %cst = arith.constant dense<0.000000e+00> : vector<8x256xf32>
    %70 = tpu.matmul %3, %69, %cst {dimension_numbers = #tpu.dot_dimension_numbers<[1], [0], [0], [1], [0, 0, 1, 1], [], []>} : vector<8x72xf32>, vector<72x256xf32>, vector<8x256xf32> -> vector<8x256xf32>
    %71 = vector.broadcast %4 : vector<8x1xf32> to vector<8x256xf32>
    %72 = arith.addf %70, %71 : vector<8x256xf32>
    %cst_8 = arith.constant 0.000000e+00 : f32
    %73 = vector.broadcast %cst_8 : f32 to vector<8x256xf32>
    %74 = arith.cmpf ogt, %72, %73 : vector<8x256xf32>
    %cst_9 = arith.constant 0.00999999977 : f32
    %75 = vector.broadcast %cst_9 : f32 to vector<8x256xf32>
    %76 = arith.mulf %75, %72 : vector<8x256xf32>
    %77 = arith.select %74, %72, %76 : vector<8x256xi1>, vector<8x256xf32>
    %c0_10 = arith.constant 0 : index
    %c0_11 = arith.constant 0 : index
    %78 = vector.load %arg4[%c0_10, %c0_11] : memref<28x72xf32, #tpu.memory_space<vmem>>, vector<28x72xf32>
    %c0_12 = arith.constant 0 : index
    %c0_13 = arith.constant 0 : index
    %79 = vector.load %arg5[%c0_12, %c0_13] : memref<28x1xf32, #tpu.memory_space<vmem>>, vector<28x1xf32>
    %80 = vector.extract_strided_slice %77 {offsets = [0, 239], sizes = [8, 17], strides = [1, 1]} : vector<8x256xf32> to vector<8x17xf32>
    %81 = vector.extract_strided_slice %77 {offsets = [0, 0], sizes = [8, 239], strides = [1, 1]} : vector<8x256xf32> to vector<8x239xf32>
    %82 = tpu.concatenate %80, %81 in 1 : vector<8x17xf32>, vector<8x239xf32> -> vector<8x256xf32>
    %83 = vector.extract_strided_slice %0 {offsets = [0, 0], sizes = [1, 256], strides = [1, 1]} : vector<9x256xf32> to vector<1x256xf32>
    %84 = vector.shape_cast %83 : vector<1x256xf32> to vector<256xf32>
    %85 = vector.shape_cast %84 : vector<256xf32> to vector<1x256xf32>
    %86 = vector.broadcast %85 : vector<1x256xf32> to vector<8x256xf32>
    %87 = arith.mulf %82, %86 : vector<8x256xf32>
    %88 = vector.extract_strided_slice %77 {offsets = [0, 240], sizes = [8, 16], strides = [1, 1]} : vector<8x256xf32> to vector<8x16xf32>
    %89 = vector.extract_strided_slice %77 {offsets = [0, 0], sizes = [8, 240], strides = [1, 1]} : vector<8x256xf32> to vector<8x240xf32>
    %90 = tpu.concatenate %88, %89 in 1 : vector<8x16xf32>, vector<8x240xf32> -> vector<8x256xf32>
    %91 = vector.extract_strided_slice %0 {offsets = [1, 0], sizes = [1, 256], strides = [1, 1]} : vector<9x256xf32> to vector<1x256xf32>
    %92 = vector.shape_cast %91 : vector<1x256xf32> to vector<256xf32>
    %93 = vector.shape_cast %92 : vector<256xf32> to vector<1x256xf32>
    %94 = vector.broadcast %93 : vector<1x256xf32> to vector<8x256xf32>
    %95 = arith.mulf %90, %94 : vector<8x256xf32>
    %96 = vector.extract_strided_slice %77 {offsets = [0, 241], sizes = [8, 15], strides = [1, 1]} : vector<8x256xf32> to vector<8x15xf32>
    %97 = vector.extract_strided_slice %77 {offsets = [0, 0], sizes = [8, 241], strides = [1, 1]} : vector<8x256xf32> to vector<8x241xf32>
    %98 = tpu.concatenate %96, %97 in 1 : vector<8x15xf32>, vector<8x241xf32> -> vector<8x256xf32>
    %99 = vector.extract_strided_slice %0 {offsets = [2, 0], sizes = [1, 256], strides = [1, 1]} : vector<9x256xf32> to vector<1x256xf32>
    %100 = vector.shape_cast %99 : vector<1x256xf32> to vector<256xf32>
    %101 = vector.shape_cast %100 : vector<256xf32> to vector<1x256xf32>
    %102 = vector.broadcast %101 : vector<1x256xf32> to vector<8x256xf32>
    %103 = arith.mulf %98, %102 : vector<8x256xf32>
    %104 = vector.extract_strided_slice %77 {offsets = [0, 255], sizes = [8, 1], strides = [1, 1]} : vector<8x256xf32> to vector<8x1xf32>
    %105 = vector.extract_strided_slice %77 {offsets = [0, 0], sizes = [8, 255], strides = [1, 1]} : vector<8x256xf32> to vector<8x255xf32>
    %106 = tpu.concatenate %104, %105 in 1 : vector<8x1xf32>, vector<8x255xf32> -> vector<8x256xf32>
    %107 = vector.extract_strided_slice %0 {offsets = [3, 0], sizes = [1, 256], strides = [1, 1]} : vector<9x256xf32> to vector<1x256xf32>
    %108 = vector.shape_cast %107 : vector<1x256xf32> to vector<256xf32>
    %109 = vector.shape_cast %108 : vector<256xf32> to vector<1x256xf32>
    %110 = vector.broadcast %109 : vector<1x256xf32> to vector<8x256xf32>
    %111 = arith.mulf %106, %110 : vector<8x256xf32>
    %112 = vector.extract_strided_slice %77 {offsets = [0, 1], sizes = [8, 255], strides = [1, 1]} : vector<8x256xf32> to vector<8x255xf32>
    %113 = vector.extract_strided_slice %77 {offsets = [0, 0], sizes = [8, 1], strides = [1, 1]} : vector<8x256xf32> to vector<8x1xf32>
    %114 = tpu.concatenate %112, %113 in 1 : vector<8x255xf32>, vector<8x1xf32> -> vector<8x256xf32>
    %115 = vector.extract_strided_slice %0 {offsets = [5, 0], sizes = [1, 256], strides = [1, 1]} : vector<9x256xf32> to vector<1x256xf32>
    %116 = vector.shape_cast %115 : vector<1x256xf32> to vector<256xf32>
    %117 = vector.shape_cast %116 : vector<256xf32> to vector<1x256xf32>
    %118 = vector.broadcast %117 : vector<1x256xf32> to vector<8x256xf32>
    %119 = arith.mulf %114, %118 : vector<8x256xf32>
    %120 = vector.extract_strided_slice %77 {offsets = [0, 15], sizes = [8, 241], strides = [1, 1]} : vector<8x256xf32> to vector<8x241xf32>
    %121 = vector.extract_strided_slice %77 {offsets = [0, 0], sizes = [8, 15], strides = [1, 1]} : vector<8x256xf32> to vector<8x15xf32>
    %122 = tpu.concatenate %120, %121 in 1 : vector<8x241xf32>, vector<8x15xf32> -> vector<8x256xf32>
    %123 = vector.extract_strided_slice %0 {offsets = [6, 0], sizes = [1, 256], strides = [1, 1]} : vector<9x256xf32> to vector<1x256xf32>
    %124 = vector.shape_cast %123 : vector<1x256xf32> to vector<256xf32>
    %125 = vector.shape_cast %124 : vector<256xf32> to vector<1x256xf32>
    %126 = vector.broadcast %125 : vector<1x256xf32> to vector<8x256xf32>
    %127 = arith.mulf %122, %126 : vector<8x256xf32>
    %128 = vector.extract_strided_slice %77 {offsets = [0, 16], sizes = [8, 240], strides = [1, 1]} : vector<8x256xf32> to vector<8x240xf32>
    %129 = vector.extract_strided_slice %77 {offsets = [0, 0], sizes = [8, 16], strides = [1, 1]} : vector<8x256xf32> to vector<8x16xf32>
    %130 = tpu.concatenate %128, %129 in 1 : vector<8x240xf32>, vector<8x16xf32> -> vector<8x256xf32>
    %131 = vector.extract_strided_slice %0 {offsets = [7, 0], sizes = [1, 256], strides = [1, 1]} : vector<9x256xf32> to vector<1x256xf32>
    %132 = vector.shape_cast %131 : vector<1x256xf32> to vector<256xf32>
    %133 = vector.shape_cast %132 : vector<256xf32> to vector<1x256xf32>
    %134 = vector.broadcast %133 : vector<1x256xf32> to vector<8x256xf32>
    %135 = arith.mulf %130, %134 : vector<8x256xf32>
    %136 = vector.extract_strided_slice %77 {offsets = [0, 17], sizes = [8, 239], strides = [1, 1]} : vector<8x256xf32> to vector<8x239xf32>
    %137 = vector.extract_strided_slice %77 {offsets = [0, 0], sizes = [8, 17], strides = [1, 1]} : vector<8x256xf32> to vector<8x17xf32>
    %138 = tpu.concatenate %136, %137 in 1 : vector<8x239xf32>, vector<8x17xf32> -> vector<8x256xf32>
    %139 = vector.extract_strided_slice %0 {offsets = [8, 0], sizes = [1, 256], strides = [1, 1]} : vector<9x256xf32> to vector<1x256xf32>
    %140 = vector.shape_cast %139 : vector<1x256xf32> to vector<256xf32>
    %141 = vector.shape_cast %140 : vector<256xf32> to vector<1x256xf32>
    %142 = vector.broadcast %141 : vector<1x256xf32> to vector<8x256xf32>
    %143 = arith.mulf %138, %142 : vector<8x256xf32>
    %144 = tpu.concatenate %87, %95, %103, %111, %77, %119, %127, %135, %143 in 0 : vector<8x256xf32>, vector<8x256xf32>, vector<8x256xf32>, vector<8x256xf32>, vector<8x256xf32>, vector<8x256xf32>, vector<8x256xf32>, vector<8x256xf32>, vector<8x256xf32> -> vector<72x256xf32>
    %cst_14 = arith.constant dense<0.000000e+00> : vector<28x256xf32>
    %145 = tpu.matmul %78, %144, %cst_14 {dimension_numbers = #tpu.dot_dimension_numbers<[1], [0], [0], [1], [0, 0, 1, 1], [], []>} : vector<28x72xf32>, vector<72x256xf32>, vector<28x256xf32> -> vector<28x256xf32>
    %146 = vector.broadcast %79 : vector<28x1xf32> to vector<28x256xf32>
    %147 = arith.addf %145, %146 : vector<28x256xf32>
    %cst_15 = arith.constant 0.000000e+00 : f32
    %148 = vector.broadcast %cst_15 : f32 to vector<28x256xf32>
    %149 = arith.cmpf ogt, %147, %148 : vector<28x256xf32>
    %cst_16 = arith.constant 0.00999999977 : f32
    %150 = vector.broadcast %cst_16 : f32 to vector<28x256xf32>
    %151 = arith.mulf %150, %147 : vector<28x256xf32>
    %152 = arith.select %149, %147, %151 : vector<28x256xi1>, vector<28x256xf32>
    %c0_17 = arith.constant 0 : index
    %c0_18 = arith.constant 0 : index
    %c0_19 = arith.constant 0 : index
    %153 = vector.load %arg7[%c0_17, %c0_18, %c0_19] : memref<1x28x256xf32, #tpu.memory_space<vmem>>, vector<1x28x256xf32>
    %154 = vector.shape_cast %153 : vector<1x28x256xf32> to vector<28x256xf32>
    %155 = vector.shape_cast %152 : vector<28x256xf32> to vector<1x28x256xf32>
    tpu.vector_store %arg7[%c0_17, %c0_18, %c0_19], %155 {strides = array<i32>} : memref<1x28x256xf32, #tpu.memory_space<vmem>>, vector<1x28x256xf32>,
    return
  }
  func.func @transform_0(%arg0: i32) -> (i32, i32, i32) {
    %c0_i32 = arith.constant 0 : i32
    %c0_i32_0 = arith.constant 0 : i32
    %c0_i32_1 = arith.constant 0 : i32
    return %arg0, %c0_i32, %c0_i32_0 : i32, i32, i32
  }
  func.func @transform_1(%arg0: i32) -> (i32, i32) {
    %c0_i32 = arith.constant 0 : i32
    %c0_i32_0 = arith.constant 0 : i32
    %c0_i32_1 = arith.constant 0 : i32
    return %c0_i32, %c0_i32_0 : i32, i32
  }
  func.func @transform_2(%arg0: i32) -> (i32, i32) {
    %c0_i32 = arith.constant 0 : i32
    %c0_i32_0 = arith.constant 0 : i32
    %c0_i32_1 = arith.constant 0 : i32
    return %c0_i32, %c0_i32_0 : i32, i32
  }
  func.func @transform_3(%arg0: i32) -> (i32, i32) {
    %c0_i32 = arith.constant 0 : i32
    %c0_i32_0 = arith.constant 0 : i32
    %c0_i32_1 = arith.constant 0 : i32
    return %c0_i32, %c0_i32_0 : i32, i32
  }
  func.func @transform_4(%arg0: i32) -> (i32, i32) {
    %c0_i32 = arith.constant 0 : i32
    %c0_i32_0 = arith.constant 0 : i32
    %c0_i32_1 = arith.constant 0 : i32
    return %c0_i32, %c0_i32_0 : i32, i32
  }
  func.func @transform_5(%arg0: i32) -> (i32, i32) {
    %c0_i32 = arith.constant 0 : i32
    %c0_i32_0 = arith.constant 0 : i32
    %c0_i32_1 = arith.constant 0 : i32
    return %c0_i32, %c0_i32_0 : i32, i32
  }
  func.func @transform_6(%arg0: i32) -> (i32, i32, i32) {
    %c0_i32 = arith.constant 0 : i32
    %c0_i32_0 = arith.constant 0 : i32
    %c0_i32_1 = arith.constant 0 : i32
    return %arg0, %c0_i32, %c0_i32_0 : i32, i32, i32
  }
}

</mosaic_0001>

<llo_original>
// kernel: tpu_custom_call.1
$region0: #{tpu_custom_call.1}
  #allocation0 [shape = 'u32[]', space=smem, size = 0x4, offset = 0x4, fixed_abs, tag = 'smem constant byte address 0x4 - core index']
  #allocation1 [shape = 'u32[72,128]{1,0:T(1,128)}', space=vmem, size = 0x9000, scoped, tag = 'internal scratch']
  %s0 = inlined_call_operand.vmem [shape: f32[2,8,256], index: 0, kind: input, shape index: {}]
  %s1 = inlined_call_operand.vmem [shape: f32[8,72], index: 1, kind: input, shape index: {}]
  %s2 = inlined_call_operand.vmem [shape: f32[8,1], index: 2, kind: input, shape index: {}]
  %s3 = inlined_call_operand.hbm [shape: f32[28,72], index: 3, kind: input, shape index: {}]
  %s4 = inlined_call_operand.vmem [shape: f32[28,1], index: 4, kind: input, shape index: {}]
  %s5 = inlined_call_operand.hbm [shape: f32[9,256], index: 5, kind: input, shape index: {}]
  %s6 = inlined_call_operand.vmem [shape: f32[2,28,256], index: 6, kind: output, shape index: {}]
  %s7 = sld [smem:[#allocation0]]
  $region65: #{tpu_custom_call.1} parent=0
    _
  %s9 = ssub.s32 1, %s7
  %s10 = scalar_select 0, %s9, %s7
  $region1: #{tpu_custom_call.1} parent=0
    #allocation2 [shape = 'u8[16384]{0}', space=vmem, size = 0x4000, scoped, tag = 'input window, operand 3, single buffered']
    #allocation3 [shape = 's32[2]{0}', space=sflag, size = 0x8, scoped, tag = 'scoped memory for tpu_custom_call.1']
    #allocation4 [shape = 'u8[16384]{0}', space=vmem, size = 0x4000, scoped, tag = 'input window, operand 5, single buffered']
    #allocation5 [shape = 's32[1]{0}', space=sflag, size = 0x4, scoped, tag = 'scoped memory for tpu_custom_call.1']
    %11 = vsyncpa [#allocation3], 0
    %12 = vsyncpa [#allocation5], 0
    loop: start=0, step=1, limit=4
    $region2: #{tpu_custom_call.1} parent=1 // loop_pre_header
      _
    $region3: #{tpu_custom_call.1} parent=1 // loop_header
      %s14 = sphi 0, %s18
      %p15 = scmp.ge.s32.totalorder %s14, 4
      %s24 = sphi 0, %s26
      %s27 = sphi 0, %s24
      %s28 = sphi 0, %s27
      %s44 = sphi 0, %s28
      %s48 = sphi 0, %s48
      %s50 = sphi 0, %s48
      %s51 = sphi 0, %s50
      %s65 = sphi 0, %s51
      %s69 = sphi 0, %s69
      %s71 = sphi 0, %s69
      %s72 = sphi 0, %s71
      %s86 = sphi 0, %s72
      %s90 = sphi 0, %s90
      %s92 = sphi 0, %s90
      %s93 = sphi 0, %s92
      %s107 = sphi 0, %s93
      %s111 = sphi 0, %s111
      %s113 = sphi 0, %s111
      %s114 = sphi 0, %s113
      %s128 = sphi 0, %s114
      %s132 = sphi 0, %s132
      %s134 = sphi 0, %s132
      %s135 = sphi 0, %s134
      %s149 = sphi 0, %s135
      %s155 = sphi 0, %s157
      %s158 = sphi 0, %s155
      %s159 = sphi 0, %s158
      %s175 = sphi 0, %s159
    $region4: #{tpu_custom_call.1} parent=1 // loop_header_branch
      %17 = sbr.rel (%p15) target = $region8
    $region5: #{tpu_custom_call.1} parent=1 // loop_body
      %s19 = ssub.s32 %s14, 1
      %s20 = ssub.s32 %s14, 2
      %s21 = sadd.s32 %s14, 1
      %s22 = ssub.s32 %s14, %s21
      %p23 = scmp.eq.s32.totalorder %s22, 0
      %s25 = sadd.s32 %s24, 1
      %s26 = scalar_select %p23, %s24, %s25
      %p29 = pneg %p23
      %p30 = scmp.eq.s32.totalorder %s14, 1
      %p31 = por %p29, %p30
      %p32 = scmp.ne.s32.totalorder %s24, %s27
      %p33 = scmp.eq.s32.totalorder %s14, 0
      %p34 = por %p32, %p33
      %p35 = scmp.ne.s32.totalorder %s24, %s27
      %p36 = scmp.eq.s32.totalorder %s19, 1
      %p37 = por %p35, %p36
      %p38 = scmp.ne.s32.totalorder %s27, %s28
      %p39 = scmp.eq.s32.totalorder %s19, 0
      %p40 = por %p38, %p39
      %p41 = scmp.ne.s32.totalorder %s27, %s28
      %p42 = scmp.eq.s32.totalorder %s20, 1
      %p43 = por %p41, %p42
      %p45 = scmp.ne.s32.totalorder %s28, %s44
      %p46 = scmp.eq.s32.totalorder %s20, 0
      %p47 = por %p45, %p46
      %s49 = sadd.s32 %s48, 1
      %p52 = scmp.eq.s32.totalorder %s14, 1
      %p53 = scmp.ne.s32.totalorder %s48, %s50
      %p54 = scmp.eq.s32.totalorder %s14, 0
      %p55 = por %p53, %p54
      %p56 = scmp.ne.s32.totalorder %s48, %s50
      %p57 = scmp.eq.s32.totalorder %s19, 1
      %p58 = por %p56, %p57
      %p59 = scmp.ne.s32.totalorder %s50, %s51
      %p60 = scmp.eq.s32.totalorder %s19, 0
      %p61 = por %p59, %p60
      %p62 = scmp.ne.s32.totalorder %s50, %s51
      %p63 = scmp.eq.s32.totalorder %s20, 1
      %p64 = por %p62, %p63
      %p66 = scmp.ne.s32.totalorder %s51, %s65
      %p67 = scmp.eq.s32.totalorder %s20, 0
      %p68 = por %p66, %p67
      %s70 = sadd.s32 %s69, 1
      %p73 = scmp.eq.s32.totalorder %s14, 1
      %p74 = scmp.ne.s32.totalorder %s69, %s71
      %p75 = scmp.eq.s32.totalorder %s14, 0
      %p76 = por %p74, %p75
      %p77 = scmp.ne.s32.totalorder %s69, %s71
      %p78 = scmp.eq.s32.totalorder %s19, 1
      %p79 = por %p77, %p78
      %p80 = scmp.ne.s32.totalorder %s71, %s72
      %p81 = scmp.eq.s32.totalorder %s19, 0
      %p82 = por %p80, %p81
      %p83 = scmp.ne.s32.totalorder %s71, %s72
      %p84 = scmp.eq.s32.totalorder %s20, 1
      %p85 = por %p83, %p84
      %p87 = scmp.ne.s32.totalorder %s72, %s86
      %p88 = scmp.eq.s32.totalorder %s20, 0
      %p89 = por %p87, %p88
      %s91 = sadd.s32 %s90, 1
      %p94 = scmp.eq.s32.totalorder %s14, 1
      %p95 = scmp.ne.s32.totalorder %s90, %s92
      %p96 = scmp.eq.s32.totalorder %s14, 0
      %p97 = por %p95, %p96
      %p98 = scmp.ne.s32.totalorder %s90, %s92
      %p99 = scmp.eq.s32.totalorder %s19, 1
      %p100 = por %p98, %p99
      %p101 = scmp.ne.s32.totalorder %s92, %s93
      %p102 = scmp.eq.s32.totalorder %s19, 0
      %p103 = por %p101, %p102
      %p104 = scmp.ne.s32.totalorder %s92, %s93
      %p105 = scmp.eq.s32.totalorder %s20, 1
      %p106 = por %p104, %p105
      %p108 = scmp.ne.s32.totalorder %s93, %s107
      %p109 = scmp.eq.s32.totalorder %s20, 0
      %p110 = por %p108, %p109
      %s112 = sadd.s32 %s111, 1
      %p115 = scmp.eq.s32.totalorder %s14, 1
      %p116 = scmp.ne.s32.totalorder %s111, %s113
      %p117 = scmp.eq.s32.totalorder %s14, 0
      %p118 = por %p116, %p117
      %p119 = scmp.ne.s32.totalorder %s111, %s113
      %p120 = scmp.eq.s32.totalorder %s19, 1
      %p121 = por %p119, %p120
      %p122 = scmp.ne.s32.totalorder %s113, %s114
      %p123 = scmp.eq.s32.totalorder %s19, 0
      %p124 = por %p122, %p123
      %p125 = scmp.ne.s32.totalorder %s113, %s114
      %p126 = scmp.eq.s32.totalorder %s20, 1
      %p127 = por %p125, %p126
      %p129 = scmp.ne.s32.totalorder %s114, %s128
      %p130 = scmp.eq.s32.totalorder %s20, 0
      %p131 = por %p129, %p130
      %s133 = sadd.s32 %s132, 1
      %p136 = scmp.eq.s32.totalorder %s14, 1
      %p137 = scmp.ne.s32.totalorder %s132, %s134
      %p138 = scmp.eq.s32.totalorder %s14, 0
      %p139 = por %p137, %p138
      %p140 = scmp.ne.s32.totalorder %s132, %s134
      %p141 = scmp.eq.s32.totalorder %s19, 1
      %p142 = por %p140, %p141
      %p143 = scmp.ne.s32.totalorder %s134, %s135
      %p144 = scmp.eq.s32.totalorder %s19, 0
      %p145 = por %p143, %p144
      %p146 = scmp.ne.s32.totalorder %s134, %s135
      %p147 = scmp.eq.s32.totalorder %s20, 1
      %p148 = por %p146, %p147
      %p150 = scmp.ne.s32.totalorder %s135, %s149
      %p151 = scmp.eq.s32.totalorder %s20, 0
      %p152 = por %p150, %p151
      %s153 = ssub.s32 %s14, %s21
      %p154 = scmp.eq.s32.totalorder %s153, 0
      %s156 = sadd.s32 %s155, 1
      %s157 = scalar_select %p154, %s155, %s156
      %p160 = pneg %p154
      %p161 = scmp.eq.s32.totalorder %s14, 1
      %p162 = por %p160, %p161
      %p163 = scmp.ne.s32.totalorder %s155, %s158
      %p164 = scmp.eq.s32.totalorder %s14, 0
      %p165 = por %p163, %p164
      %p166 = scmp.ne.s32.totalorder %s155, %s158
      %p167 = scmp.eq.s32.totalorder %s19, 1
      %p168 = por %p166, %p167
      %p169 = scmp.ne.s32.totalorder %s158, %s159
      %p170 = scmp.eq.s32.totalorder %s19, 0
      %p171 = por %p169, %p170
      %p172 = scmp.ne.s32.totalorder %s158, %s159
      %p173 = scmp.eq.s32.totalorder %s20, 1
      %p174 = por %p172, %p173
      %p176 = scmp.ne.s32.totalorder %s159, %s175
      %p177 = scmp.eq.s32.totalorder %s20, 0
      %p178 = por %p176, %p177
      %p179 = scmp.le.s32.totalorder 1, %s14
      %p180 = scmp.lt.s32.totalorder %s14, 3
      %p181 = pnand %p179, %p180
      %p182 = pneg %p181
      // Predicated region
      $region9: #{tpu_custom_call.1} parent=5 // pred_check
        _
      $region10: #{tpu_custom_call.1} parent=5 // pred_check_branch
        %184 = sbr.rel (%p181) target = $region12
      $region11: #{tpu_custom_call.1} parent=5 // pred_region
        %s185 = ssub.s32 %s14, 1
        // Predicated region
        $region13: #{tpu_custom_call.1} parent=11 // pred_check
          %p186 = pneg %p61
        $region14: #{tpu_custom_call.1} parent=11 // pred_check_branch
          %188 = sbr.rel (%p186) target = $region16
        $region15: #{tpu_custom_call.1} parent=11 // pred_region
          _
        $region16: #{tpu_custom_call.1} parent=11 // pred_fallthru
          _
        // Predicated region
        $region17: #{tpu_custom_call.1} parent=11 // pred_check
          %p189 = pneg %p82
        $region18: #{tpu_custom_call.1} parent=11 // pred_check_branch
          %191 = sbr.rel (%p189) target = $region20
        $region19: #{tpu_custom_call.1} parent=11 // pred_region
          _
        $region20: #{tpu_custom_call.1} parent=11 // pred_fallthru
          _
        // Predicated region
        $region21: #{tpu_custom_call.1} parent=11 // pred_check
          %p192 = pneg %p103
        $region22: #{tpu_custom_call.1} parent=11 // pred_check_branch
          %194 = sbr.rel (%p192) target = $region24
        $region23: #{tpu_custom_call.1} parent=11 // pred_region
          %196 = vsyncadd [#allocation3], 0
          %s197 = sshll.u32 %s3, 4
          %s198 = int_to_ptr.hbm [resolvable:$true] %s197
          %s199 = sshll.u32 [#allocation2], 4
          %s200 = int_to_ptr.vmem [resolvable:$true] %s199
          %205 = dma.hbm_to_vmem [thread:$0]  %s198, 512, %s200, [#allocation3], 128, 128, 8
        $region24: #{tpu_custom_call.1} parent=11 // pred_fallthru
          _
        // Predicated region
        $region25: #{tpu_custom_call.1} parent=11 // pred_check
          %p206 = pneg %p124
        $region26: #{tpu_custom_call.1} parent=11 // pred_check_branch
          %208 = sbr.rel (%p206) target = $region28
        $region27: #{tpu_custom_call.1} parent=11 // pred_region
          _
        $region28: #{tpu_custom_call.1} parent=11 // pred_fallthru
          _
        // Predicated region
        $region29: #{tpu_custom_call.1} parent=11 // pred_check
          %p209 = pneg %p145
        $region30: #{tpu_custom_call.1} parent=11 // pred_check_branch
          %211 = sbr.rel (%p209) target = $region32
        $region31: #{tpu_custom_call.1} parent=11 // pred_region
          %213 = vsyncadd [#allocation5], 0
          %s214 = sshll.u32 %s5, 4
          %s215 = int_to_ptr.hbm [resolvable:$true] %s214
          %s216 = sshll.u32 [#allocation4], 4
          %s217 = int_to_ptr.vmem [resolvable:$true] %s216
          %222 = dma.hbm_to_vmem [thread:$0]  %s215, 512, %s217, [#allocation5], 256, 256, 16
        $region32: #{tpu_custom_call.1} parent=11 // pred_fallthru
          _
      $region12: #{tpu_custom_call.1} parent=5 // pred_fallthru
        _
      %p223 = scmp.lt.s32.totalorder %s14, 2
      // Predicated region
      $region33: #{tpu_custom_call.1} parent=5 // pred_check
        %p224 = pneg %p223
      $region34: #{tpu_custom_call.1} parent=5 // pred_check_branch
        %226 = sbr.rel (%p224) target = $region36
      $region35: #{tpu_custom_call.1} parent=5 // pred_region
        // Predicated region
        $region37: #{tpu_custom_call.1} parent=35 // pred_check
          %p227 = pneg %p34
        $region38: #{tpu_custom_call.1} parent=35 // pred_check_branch
          %229 = sbr.rel (%p227) target = $region40
        $region39: #{tpu_custom_call.1} parent=35 // pred_region
          %p230 = scmp.lt.s32.totalorder %s14, 1
          %s231 = scalar_select %p230, %s14, 1
          %s232 = smul.addr %s231, 2
          %s233 = smul.addr %s232, 8
          %s234 = scalar_lea.vmem %s0, %s233
        $region40: #{tpu_custom_call.1} parent=35 // pred_fallthru
          _
      $region36: #{tpu_custom_call.1} parent=5 // pred_fallthru
        _
      %p235 = scmp.le.s32.totalorder 1, %s14
      %p236 = scmp.lt.s32.totalorder %s14, 3
      %p237 = pnand %p235, %p236
      %p238 = pneg %p237
      // Predicated region
      $region41: #{tpu_custom_call.1} parent=5 // pred_check
        _
      $region42: #{tpu_custom_call.1} parent=5 // pred_check_branch
        %240 = sbr.rel (%p237) target = $region44
      $region43: #{tpu_custom_call.1} parent=5 // pred_region
        %s241 = ssub.s32 %s14, 1
        // Predicated region
        $region45: #{tpu_custom_call.1} parent=43 // pred_check
          %p242 = pneg %p103
        $region46: #{tpu_custom_call.1} parent=43 // pred_check_branch
          %244 = sbr.rel (%p242) target = $region48
        $region47: #{tpu_custom_call.1} parent=43 // pred_region
          %246 = dma.done [#allocation3], 512
        $region48: #{tpu_custom_call.1} parent=43 // pred_fallthru
          _
        // Predicated region
        $region49: #{tpu_custom_call.1} parent=43 // pred_check
          %p247 = pneg %p145
        $region50: #{tpu_custom_call.1} parent=43 // pred_check_branch
          %249 = sbr.rel (%p247) target = $region52
        $region51: #{tpu_custom_call.1} parent=43 // pred_region
          %251 = dma.done [#allocation5], 512
        $region52: #{tpu_custom_call.1} parent=43 // pred_fallthru
          _
        %p252 = scmp.lt.s32.totalorder %s19, 1
        %s253 = scalar_select %p252, %s19, 1
        %s254 = smul.addr %s253, 2
        %s255 = smul.addr %s254, 8
        %s256 = scalar_lea.vmem %s0, %s255
        %p257 = pneg %p40
        %p258 = pneg %p37
        %p259 = pneg %p61
        %p260 = pneg %p58
        %p261 = pneg %p82
        %p262 = pneg %p79
        %p263 = pneg %p103
        %p264 = pneg %p100
        %p265 = pneg %p124
        %p266 = pneg %p121
        %p267 = pneg %p145
        %p268 = pneg %p142
        %p269 = pneg %p171
        %p270 = pneg %p168
        %p271 = scmp.lt.s32.totalorder %s19, 1
        %s272 = scalar_select %p271, %s19, 1
        %s273 = smul.addr %s272, 8
        %s274 = smul.addr %s273, 8
        %s275 = scalar_lea.vmem %s6, %s274
        %p276 = scmp.lt.s32.totalorder %s19, 1
        %s277 = scalar_select %p276, %s19, 1
        %s278 = smul.addr %s277, 2
        %s279 = smul.addr %s278, 8
        %s280 = scalar_lea.vmem %s0, %s279
        %p281 = scmp.lt.s32.totalorder %s19, 1
        %s282 = scalar_select %p281, %s19, 1
        %s283 = smul.addr %s282, 8
        %s284 = smul.addr %s283, 8
        %s285 = scalar_lea.vmem %s6, %s284
        %v286 = vld [vmem:[#allocation4] sm:$0xff]
        %v287 = vld [vmem:[#allocation4 + $0x8] sm:$0xff]
        %v288 = vld [vmem:[#allocation4 + $0x10] sm:$0x1]
        %v289 = vld [vmem:[#allocation4 + $0x18] sm:$0x1]
        %v290 = vld [vmem:[%s280] sm:$0xff]
        %v291 = vld [vmem:[%s280 + $0x8] sm:$0xff]
        %v292 = vld [vmem:[%s1] sm:$0xff]
        %v293 = vld [vmem:[%s2] sm:$0xff]
        %295 = vrot.lane.b32.xlu0 %v291, 17
        %v296 = vpop.permute.xlu0 %295
        %299 = vrot.lane.b32.xlu0 %v290, 17
        %v300 = vpop.permute.xlu0 %299
        %vm301 = vcmask 138240
        %v302 = vsel %vm301, %v300, %v296
        %v305 = vsel %vm301, %v296, %v300
        %v306 = vperm.slane %v286, 0
        %v307 = vperm.slane %v287, 0
        %v308 = vmul.f32 %v305, %v306
        %v309 = vmul.f32 %v302, %v307
        %310 = vrot.lane.b32.xlu0 %v291, 16
        %v311 = vpop.permute.xlu0 %310
        %313 = vrot.lane.b32.xlu0 %v290, 16
        %v314 = vpop.permute.xlu0 %313
        %vm315 = vcmask 130048
        %v316 = vsel %vm315, %v314, %v311
        %v319 = vsel %vm315, %v311, %v314
        %v320 = vperm.slane %v286, 1
        %v321 = vperm.slane %v287, 1
        %v322 = vmul.f32 %v319, %v320
        %v323 = vmul.f32 %v316, %v321
        %324 = vrot.lane.b32.xlu0 %v291, 15
        %v325 = vpop.permute.xlu0 %324
        %327 = vrot.lane.b32.xlu0 %v290, 15
        %v328 = vpop.permute.xlu0 %327
        %vm329 = vcmask 121856
        %v330 = vsel %vm329, %v328, %v325
        %v333 = vsel %vm329, %v325, %v328
        %v334 = vperm.slane %v286, 2
        %v335 = vperm.slane %v287, 2
        %v336 = vmul.f32 %v333, %v334
        %v337 = vmul.f32 %v330, %v335
        %338 = vrot.lane.b32.xlu0 %v291, 1
        %v339 = vpop.permute.xlu0 %338
        %341 = vrot.lane.b32.xlu0 %v290, 1
        %v342 = vpop.permute.xlu0 %341
        %vm343 = vcmask 7168
        %v344 = vsel %vm343, %v342, %v339
        %v347 = vsel %vm343, %v339, %v342
        %v348 = vperm.slane %v286, 3
        %v349 = vperm.slane %v287, 3
        %v350 = vmul.f32 %v347, %v348
        %v351 = vmul.f32 %v344, %v349
        %352 = vrot.lane.b32.xlu0 %v290, 127
        %v353 = vpop.permute.xlu0 %352
        %354 = vrot.lane.b32.xlu0 %v291, 127
        %v355 = vpop.permute.xlu0 %354
        %vm356 = vcmask 1039360
        %v357 = vsel %vm356, %v353, %v355
        %v361 = vsel %vm356, %v355, %v353
        %v362 = vperm.slane %v286, 5
        %v363 = vperm.slane %v287, 5
        %v364 = vmul.f32 %v357, %v362
        %v365 = vmul.f32 %v361, %v363
        %366 = vrot.lane.b32.xlu0 %v290, 113
        %v367 = vpop.permute.xlu0 %366
        %368 = vrot.lane.b32.xlu0 %v291, 113
        %v369 = vpop.permute.xlu0 %368
        %vm370 = vcmask 924672
        %v371 = vsel %vm370, %v367, %v369
        %v375 = vsel %vm370, %v369, %v367
        %v376 = vperm.slane %v286, 6
        %v377 = vperm.slane %v287, 6
        %v378 = vmul.f32 %v371, %v376
        %v379 = vmul.f32 %v375, %v377
        %380 = vrot.lane.b32.xlu0 %v290, 112
        %v381 = vpop.permute.xlu0 %380
        %382 = vrot.lane.b32.xlu0 %v291, 112
        %v383 = vpop.permute.xlu0 %382
        %vm384 = vcmask 916480
        %v385 = vsel %vm384, %v381, %v383
        %v389 = vsel %vm384, %v383, %v381
        %v390 = vperm.slane %v286, 7
        %v391 = vperm.slane %v287, 7
        %v392 = vmul.f32 %v385, %v390
        %v393 = vmul.f32 %v389, %v391
        %394 = vrot.lane.b32.xlu0 %v290, 111
        %v395 = vpop.permute.xlu0 %394
        %396 = vrot.lane.b32.xlu0 %v291, 111
        %v397 = vpop.permute.xlu0 %396
        %vm398 = vcmask 908288
        %v399 = vsel %vm398, %v395, %v397
        %v403 = vsel %vm398, %v397, %v395
        %v404 = vperm.slane %v288, 0
        %v405 = vperm.slane %v289, 0
        %v406 = vmul.f32 %v399, %v404
        %v407 = vmul.f32 %v403, %v405
        %409 = vset.pattern.permute.xlu0 0
        %410 = vperm.xlu0 %409, %v293
        %v411 = vpop.permute.xlu0 %410
        %vm413 = vcmask 588800
        %v415 = vsel %vm413, %v292, 0
        %417 = vmatpush.msra.mxu0 0.0
        %418 = vmatpush.msra.mxu0 0.0
        %419 = vmatpush.msra.mxu0 0.0
        %420 = vmatpush.msra.mxu0 0.0
        %421 = vmatpush.msra.mxu0 0.0
        %422 = vmatpush.msra.mxu0 0.0
        %423 = vmatpush.msra.mxu0 0.0
        %424 = vmatpush.msra.mxu0 %v406
        %425 = vmatpush.msra.mxu0 %v392
        %426 = vmatpush.msra.mxu0 %v378
        %427 = vmatpush.msra.mxu0 %v364
        %428 = vmatpush.msra.mxu0 %v290
        %429 = vmatpush.msra.mxu0 %v350
        %430 = vmatpush.msra.mxu0 %v336
        %431 = vmatpush.msra.mxu0 %v322
        %432 = vmatpush.msra.mxu0 %v308
        %433 = vmatmul.f32.gmra.mxu0 %v415
        %v434 = vpop.f32.mrf.mxu0
        %v435 = vadd.f32 %v411, %v434
        %436 = vdwg.mxu0
        %437 = vmatpush.msra.mxu0 0.0
        %438 = vmatpush.msra.mxu0 0.0
        %439 = vmatpush.msra.mxu0 0.0
        %440 = vmatpush.msra.mxu0 0.0
        %441 = vmatpush.msra.mxu0 0.0
        %442 = vmatpush.msra.mxu0 0.0
        %443 = vmatpush.msra.mxu0 0.0
        %444 = vmatpush.msra.mxu0 %v407
        %445 = vmatpush.msra.mxu0 %v393
        %446 = vmatpush.msra.mxu0 %v379
        %447 = vmatpush.msra.mxu0 %v365
        %448 = vmatpush.msra.mxu0 %v291
        %449 = vmatpush.msra.mxu0 %v351
        %450 = vmatpush.msra.mxu0 %v337
        %451 = vmatpush.msra.mxu0 %v323
        %452 = vmatpush.msra.mxu0 %v309
        %453 = vmatmul.f32.gmra.mxu0 %v415
        %v454 = vpop.f32.mrf.mxu0
        %v455 = vadd.f32 %v411, %v454
        %456 = vdwg.mxu0
        %vm457 = vcmp.gt.f32.partialorder %v435, 0.0
        %vm458 = vcmp.gt.f32.partialorder %v455, 0.0
        %v459 = vmul.f32 %v435, 0.01
        %v460 = vmul.f32 %v455, 0.01
        %v461 = vsel %vm457, %v435, %v459
        %v462 = vsel %vm458, %v455, %v460
        %v463 = vld [vmem:[#allocation2] sm:$0xff]
        %v464 = vld [vmem:[#allocation2 + $0x8] sm:$0xff]
        %v465 = vld [vmem:[#allocation2 + $0x10] sm:$0xff]
        %v466 = vld [vmem:[#allocation2 + $0x18] sm:$0xf]
        %v467 = vld [vmem:[%s4] sm:$0xff]
        %v468 = vld [vmem:[%s4 + $0x8] sm:$0xff]
        %v469 = vld [vmem:[%s4 + $0x10] sm:$0xff]
        %v470 = vld [vmem:[%s4 + $0x18] sm:$0xf]
        %472 = vrot.lane.b32.xlu0 %v462, 17
        %v473 = vpop.permute.xlu0 %472
        %476 = vrot.lane.b32.xlu0 %v461, 17
        %v477 = vpop.permute.xlu0 %476
        %v478 = vsel %vm301, %v477, %v473
        %v481 = vsel %vm301, %v473, %v477
        %v482 = vmul.f32 %v481, %v306
        %v483 = vmul.f32 %v478, %v307
        %484 = vrot.lane.b32.xlu0 %v462, 16
        %v485 = vpop.permute.xlu0 %484
        %487 = vrot.lane.b32.xlu0 %v461, 16
        %v488 = vpop.permute.xlu0 %487
        %v489 = vsel %vm315, %v488, %v485
        %v492 = vsel %vm315, %v485, %v488
        %v493 = vmul.f32 %v492, %v320
        %v494 = vmul.f32 %v489, %v321
        %495 = vrot.lane.b32.xlu0 %v462, 15
        %v496 = vpop.permute.xlu0 %495
        %498 = vrot.lane.b32.xlu0 %v461, 15
        %v499 = vpop.permute.xlu0 %498
        %v500 = vsel %vm329, %v499, %v496
        %v503 = vsel %vm329, %v496, %v499
        %v504 = vmul.f32 %v503, %v334
        %v505 = vmul.f32 %v500, %v335
        %506 = vrot.lane.b32.xlu0 %v462, 1
        %v507 = vpop.permute.xlu0 %506
        %509 = vrot.lane.b32.xlu0 %v461, 1
        %v510 = vpop.permute.xlu0 %509
        %v511 = vsel %vm343, %v510, %v507
        %v514 = vsel %vm343, %v507, %v510
        %v515 = vmul.f32 %v514, %v348
        %v516 = vmul.f32 %v511, %v349
        %517 = vrot.lane.b32.xlu0 %v461, 127
        %v518 = vpop.permute.xlu0 %517
        %519 = vrot.lane.b32.xlu0 %v462, 127
        %v520 = vpop.permute.xlu0 %519
        %v521 = vsel %vm356, %v518, %v520
        %v525 = vsel %vm356, %v520, %v518
        %v526 = vmul.f32 %v521, %v362
        %v527 = vmul.f32 %v525, %v363
        %528 = vrot.lane.b32.xlu0 %v461, 113
        %v529 = vpop.permute.xlu0 %528
        %530 = vrot.lane.b32.xlu0 %v462, 113
        %v531 = vpop.permute.xlu0 %530
        %v532 = vsel %vm370, %v529, %v531
        %v536 = vsel %vm370, %v531, %v529
        %v537 = vmul.f32 %v532, %v376
        %v538 = vmul.f32 %v536, %v377
        %539 = vrot.lane.b32.xlu0 %v461, 112
        %v540 = vpop.permute.xlu0 %539
        %541 = vrot.lane.b32.xlu0 %v462, 112
        %v542 = vpop.permute.xlu0 %541
        %v543 = vsel %vm384, %v540, %v542
        %v547 = vsel %vm384, %v542, %v540
        %v548 = vmul.f32 %v543, %v390
        %v549 = vmul.f32 %v547, %v391
        %550 = vrot.lane.b32.xlu0 %v461, 111
        %v551 = vpop.permute.xlu0 %550
        %552 = vrot.lane.b32.xlu0 %v462, 111
        %v553 = vpop.permute.xlu0 %552
        %v554 = vsel %vm398, %v551, %v553
        %v558 = vsel %vm398, %v553, %v551
        %v559 = vmul.f32 %v554, %v404
        %v560 = vmul.f32 %v558, %v405
        %562 = vset.pattern.permute.xlu0 0
        %563 = vperm.xlu0 %562, %v467
        %v564 = vpop.permute.xlu0 %563
        %567 = vset.pattern.permute.xlu0 0
        %568 = vperm.xlu0 %567, %v468
        %v569 = vpop.permute.xlu0 %568
        %572 = vset.pattern.permute.xlu0 0
        %573 = vperm.xlu0 %572, %v469
        %v574 = vpop.permute.xlu0 %573
        %577 = vset.pattern.permute.xlu0 0
        %578 = vperm.xlu0 %577, %v470
        %v579 = vpop.permute.xlu0 %578
        %v582 = vsel %vm413, %v463, 0
        %v585 = vsel %vm413, %v464, 0
        %v588 = vsel %vm413, %v465, 0
        %v591 = vsel %vm413, %v466, 0
        %593 = vmatpush.msra.mxu0 0.0
        %594 = vmatpush.msra.mxu0 0.0
        %595 = vmatpush.msra.mxu0 0.0
        %596 = vmatpush.msra.mxu0 0.0
        %597 = vmatpush.msra.mxu0 0.0
        %598 = vmatpush.msra.mxu0 0.0
        %599 = vmatpush.msra.mxu0 0.0
        %600 = vmatpush.msra.mxu0 %v559
        %601 = vmatpush.msra.mxu0 %v548
        %602 = vmatpush.msra.mxu0 %v537
        %603 = vmatpush.msra.mxu0 %v526
        %604 = vmatpush.msra.mxu0 %v461
        %605 = vmatpush.msra.mxu0 %v515
        %606 = vmatpush.msra.mxu0 %v504
        %607 = vmatpush.msra.mxu0 %v493
        %608 = vmatpush.msra.mxu0 %v482
        %609 = vmatmul.f32.gmra.mxu0 %v582
        %v610 = vpop.f32.mrf.mxu0
        %v611 = vadd.f32 %v564, %v610
        %612 = vmatmul.f32.gmra.mxu0 %v585
        %v613 = vpop.f32.mrf.mxu0
        %v614 = vadd.f32 %v569, %v613
        %615 = vmatmul.f32.gmra.mxu0 %v588
        %v616 = vpop.f32.mrf.mxu0
        %v617 = vadd.f32 %v574, %v616
        %618 = vmatmul.f32.gmra.mxu0 %v591
        %v619 = vpop.f32.mrf.mxu0
        %v620 = vadd.f32 %v579, %v619
        %621 = vdwg.mxu0
        %622 = vmatpush.msra.mxu0 0.0
        %623 = vmatpush.msra.mxu0 0.0
        %624 = vmatpush.msra.mxu0 0.0
        %625 = vmatpush.msra.mxu0 0.0
        %626 = vmatpush.msra.mxu0 0.0
        %627 = vmatpush.msra.mxu0 0.0
        %628 = vmatpush.msra.mxu0 0.0
        %629 = vmatpush.msra.mxu0 %v560
        %630 = vmatpush.msra.mxu0 %v549
        %631 = vmatpush.msra.mxu0 %v538
        %632 = vmatpush.msra.mxu0 %v527
        %633 = vmatpush.msra.mxu0 %v462
        %634 = vmatpush.msra.mxu0 %v516
        %635 = vmatpush.msra.mxu0 %v505
        %636 = vmatpush.msra.mxu0 %v494
        %637 = vmatpush.msra.mxu0 %v483
        %638 = vmatmul.f32.gmra.mxu0 %v582
        %v639 = vpop.f32.mrf.mxu0
        %v640 = vadd.f32 %v564, %v639
        %641 = vmatmul.f32.gmra.mxu0 %v585
        %v642 = vpop.f32.mrf.mxu0
        %v643 = vadd.f32 %v569, %v642
        %644 = vmatmul.f32.gmra.mxu0 %v588
        %v645 = vpop.f32.mrf.mxu0
        %v646 = vadd.f32 %v574, %v645
        %647 = vmatmul.f32.gmra.mxu0 %v591
        %v648 = vpop.f32.mrf.mxu0
        %v649 = vadd.f32 %v579, %v648
        %650 = vdwg.mxu0
        %vm651 = vcmp.gt.f32.partialorder %v611, 0.0
        %vm652 = vcmp.gt.f32.partialorder %v640, 0.0
        %vm653 = vcmp.gt.f32.partialorder %v614, 0.0
        %vm654 = vcmp.gt.f32.partialorder %v643, 0.0
        %vm655 = vcmp.gt.f32.partialorder %v617, 0.0
        %vm656 = vcmp.gt.f32.partialorder %v646, 0.0
        %vm657 = vcmp.gt.f32.partialorder %v620, 0.0
        %vm658 = vcmp.gt.f32.partialorder %v649, 0.0
        %v659 = vmul.f32 %v611, 0.01
        %v660 = vmul.f32 %v640, 0.01
        %v661 = vmul.f32 %v614, 0.01
        %v662 = vmul.f32 %v643, 0.01
        %v663 = vmul.f32 %v617, 0.01
        %v664 = vmul.f32 %v646, 0.01
        %v665 = vmul.f32 %v620, 0.01
        %v666 = vmul.f32 %v649, 0.01
        %v667 = vsel %vm651, %v611, %v659
        %v668 = vsel %vm652, %v640, %v660
        %v669 = vsel %vm653, %v614, %v661
        %v670 = vsel %vm654, %v643, %v662
        %v671 = vsel %vm655, %v617, %v663
        %v672 = vsel %vm656, %v646, %v664
        %v673 = vsel %vm657, %v620, %v665
        %v674 = vsel %vm658, %v649, %v666
        %675 = vst [vmem:[%s285] sm:$0xff] %v667
        %676 = vst [vmem:[%s285 + $0x8] sm:$0xff] %v668
        %677 = vst [vmem:[%s285 + $0x10] sm:$0xff] %v669
        %678 = vst [vmem:[%s285 + $0x18] sm:$0xff] %v670
        %679 = vst [vmem:[%s285 + $0x20] sm:$0xff] %v671
        %680 = vst [vmem:[%s285 + $0x28] sm:$0xff] %v672
        %681 = vst [vmem:[%s285 + $0x30] sm:$0xf] %v673
        %682 = vst [vmem:[%s285 + $0x38] sm:$0xf] %v674
        %p683 = scmp.lt.s32.totalorder %s19, 1
        %s684 = scalar_select %p683, %s19, 1
        %s685 = smul.addr %s684, 8
        %s686 = smul.addr %s685, 8
        %s687 = scalar_lea.vmem %s6, %s686
        // Predicated region
        $region53: #{tpu_custom_call.1} parent=43 // pred_check
          %p688 = pneg %p168
        $region54: #{tpu_custom_call.1} parent=43 // pred_check_branch
          %690 = sbr.rel (%p688) target = $region56
        $region55: #{tpu_custom_call.1} parent=43 // pred_region
          _
        $region56: #{tpu_custom_call.1} parent=43 // pred_fallthru
          _
      $region44: #{tpu_custom_call.1} parent=5 // pred_fallthru
        _
      %p691 = scmp.le.s32.totalorder 2, %s14
      // Predicated region
      $region57: #{tpu_custom_call.1} parent=5 // pred_check
        %p692 = pneg %p691
      $region58: #{tpu_custom_call.1} parent=5 // pred_check_branch
        %694 = sbr.rel (%p692) target = $region60
      $region59: #{tpu_custom_call.1} parent=5 // pred_region
        %s695 = ssub.s32 %s14, 2
        // Predicated region
        $region61: #{tpu_custom_call.1} parent=59 // pred_check
          %p696 = pneg %p174
        $region62: #{tpu_custom_call.1} parent=59 // pred_check_branch
          %698 = sbr.rel (%p696) target = $region64
        $region63: #{tpu_custom_call.1} parent=59 // pred_region
          %p699 = scmp.lt.s32.totalorder %s20, 1
          %s700 = scalar_select %p699, %s20, 1
          %s701 = smul.addr %s700, 8
          %s702 = smul.addr %s701, 8
          %s703 = scalar_lea.vmem %s6, %s702
        $region64: #{tpu_custom_call.1} parent=59 // pred_fallthru
          _
      $region60: #{tpu_custom_call.1} parent=5 // pred_fallthru
        _
    $region6: #{tpu_custom_call.1} parent=1 // loop_footer
      %s18 = sadd.s32 1, %s14
    $region7: #{tpu_custom_call.1} parent=1 // loop_footer_branch
      %13 = sbr.rel target = $region3
    $region8: #{tpu_custom_call.1} parent=1 // loop_exit
      _
    %704 = vsyncpa [#allocation3], 1
    %s705 = scalar_lea.sflag [#allocation3], 1
    %706 = vsyncpa %s705, 1
    %707 = vsyncpa [#allocation5], 1

</llo_original>
